<compile_context>
chip_gen: v5e
topology: v5e:2x2
jax: 0.10.0
libtpu: 0.0.40
codegen_flags: <defaults>
</compile_context>

<pallas_src>
import functools
import math

import jax
import jax.numpy as jnp
from jax import lax
from jax.experimental import pallas as pl
from jax.experimental.pallas import tpu as pltpu


def _round_up(n: int, m: int) -> int:
    return ((n + m - 1) // m) * m


def _relative_position_kernel(ext_ref, out_ref, *, length_q, tile_q, width,
                              units, phases, aligned):
    """Copy Toeplitz rows out of the flattened, phase-shifted ext table.

    ext_ref: (phases, W) lane-flattened clamp-extended table; phase p equals
             ext_flat shifted left by p*units lanes, so every slice start used
             below is 128-lane aligned when `aligned` is True.
    out_ref: (tile_q, width) lane-dense output tile, width = length_k * units.
    """
    q0 = pl.program_id(0) * tile_q
    last = length_q - 1
    n_groups = tile_q // phases
    loop_unroll = 2 if (n_groups % 2 == 0) else 1

    def copy_group(g, carry):
        r_base = g * phases
        for pp in range(phases):                 # static unroll of <= 8 rows
            r = r_base + pp                      # row inside this tile
            start = last - (q0 + r)              # ext row feeding out col j=0
            # q0 and r_base are multiples of `phases`, so start % phases is the
            # static value below whenever start >= 0.  Padded rows (start < 0,
            # only possible in the last tile) are clamped to an in-bounds,
            # aligned offset and later sliced off by the wrapper.
            phase = (last - pp) % phases         # static Python int
            off = jnp.maximum(start - phase, 0) * units
            if aligned:
                off = pl.multiple_of(off, 128)   # multiple of phases*units == lcm(units,128)
            row = ext_ref[phase, pl.ds(off, width)]
            out_ref[r] = row.astype(out_ref.dtype)
        return carry

    lax.fori_loop(0, n_groups, copy_group, 0, unroll=loop_unroll)


def _xla_relative_position(length_q, length_k, embeddings_table,
                           max_relative_position):
    dist = (jnp.arange(length_k, dtype=jnp.int32)[None, :]
            - jnp.arange(length_q, dtype=jnp.int32)[:, None])
    idx = jnp.clip(dist, -max_relative_position, max_relative_position)
    return jnp.take(embeddings_table, idx + max_relative_position, axis=0)


def relative_position_forward(x, embeddings_table, max_relative_position, *,
                              target_tile_bytes=2 * 1024 * 1024,
                              force_pallas=False,
                              xla_fallback_elems=1 << 15):
    """Pallas equivalent of RelativePosition.forward.

    Args:
      x: array whose trailing two dims are (length_q, length_k); values unused.
      embeddings_table: (2*max_relative_position + 1, num_units) array.
      max_relative_position: int.
      target_tile_bytes: per-step output-block byte budget (grow on v6e,
        shrink on v5e/v7x if VMEM-constrained).
      force_pallas: bypass the small-shape XLA fast path (used by the tests).

    Returns:
      (length_q, length_k, num_units) array with embeddings_table's dtype.
    """
    length_q, length_k = int(x.shape[-2]), int(x.shape[-1])
    _, num_units = embeddings_table.shape
    dtype = embeddings_table.dtype

    # Tiny shapes: pallas_call fixed overhead dominates a pure-copy kernel.
    if (not force_pallas) and length_q * length_k * num_units <= xla_fallback_elems:
        return _xla_relative_position(length_q, length_k, embeddings_table,
                                      max_relative_position)

    # ---- Wrapper-side precompute: clamp-extended, flattened, phase-shifted --
    # ext[d] = table[clip(d - (Lq-1), -mr, mr) + mr],  d in [0, Lq+Lk-2]
    # so out[i, j, :] = ext[(Lq-1-i) + j, :].
    E = (length_q + length_k - 1) * num_units
    W = _round_up(E, 128)
    d = jnp.arange(length_q + length_k - 1, dtype=jnp.int32)
    rel = jnp.clip(d - (length_q - 1),
                   -max_relative_position, max_relative_position)
    ext = jnp.take(embeddings_table, rel + max_relative_position, axis=0)

    # Phase copies so in-kernel lane-slice starts are 128-aligned.
    P = 128 // math.gcd(num_units, 128)
    aligned = P <= 8                      # P in {1,2,4,8} -> divides the 8-row groups
    phases = P if aligned else 1          # fallback: correct but unaligned slices

    ext_flat = ext.reshape(-1)
    pad_to = W + (phases - 1) * num_units
    ext_flat = jnp.pad(ext_flat, (0, pad_to - E))
    ext_phases = jnp.stack(
        [ext_flat[p * num_units: p * num_units + W] for p in range(phases)],
        axis=0)                           # (phases, W)

    # ---- Tiling: byte-capped, multiple of 8 sublanes, balanced grid ---------
    width = length_k * num_units
    row_bytes = width * dtype.itemsize
    group = 8                             # sublane granularity; phases | 8
    cap_rows = max(group, (target_tile_bytes // max(row_bytes, 1)) // group * group)
    half_rows = _round_up(-(-length_q // 2), group)   # ceil(Lq/2) rounded to 8
    tile_q = max(group, min(cap_rows, half_rows))
    lq_pad = _round_up(length_q, tile_q)
    grid = (lq_pad // tile_q,)

    kernel = functools.partial(
        _relative_position_kernel,
        length_q=length_q, tile_q=tile_q, width=width,
        units=num_units, phases=phases, aligned=aligned)

    # Rough VMEM estimate: double-buffered ext (constant index_map -> one DMA,
    # but Pallas still allocates two buffers) + double-buffered output tile.
    est = 2 * (phases * W + tile_q * width) * dtype.itemsize
    vmem_limit = int(min(64 * 2**20, 2 * est)) if 2 * est > 16 * 2**20 else None

    out_flat = pl.pallas_call(
        kernel,
        out_shape=jax.ShapeDtypeStruct((lq_pad, width), dtype),
        grid_spec=pltpu.PrefetchScalarGridSpec(
            num_scalar_prefetch=0,
            grid=grid,
            in_specs=[pl.BlockSpec((phases, W), lambda q: (0, 0))],
            out_specs=pl.BlockSpec((tile_q, width), lambda q: (q, 0)),
        ),
        compiler_params=pltpu.CompilerParams(
            dimension_semantics=("parallel",),
            vmem_limit_bytes=vmem_limit),
    )(ext_phases)

    # NOTE: out depends only on (Lq, Lk, embeddings_table); in the full model
    # cache it per (Lq, Lk) (and invalidate on table updates during training).
    return out_flat[:length_q].reshape(length_q, length_k, num_units)


def _reference_forward(x, embeddings_table, max_relative_position):
    length_q, length_k = x.shape[-2], x.shape[-1]
    dist = jnp.arange(length_k)[None, :] - jnp.arange(length_q)[:, None]
    clipped = jnp.clip(dist, -max_relative_position, max_relative_position)
    return embeddings_table[clipped + max_relative_position]


if __name__ == "__main__":
    # Small, module-consistent shapes.
    num_units = 32
    max_relative_position = 8            # table has 2*8 + 1 = 17 rows
    batch, channels, length_q, length_k = 2, 4, 16, 16

    key = jax.random.PRNGKey(0)
    k_tbl, k_x = jax.random.split(key)

    # Deterministic xavier_uniform_ init (fan_in = T, fan_out = U).
    T = 2 * max_relative_position + 1
    bound = (6.0 / (T + num_units)) ** 0.5
    embeddings_table = jax.random.uniform(
        k_tbl, (T, num_units), dtype=jnp.float32, minval=-bound, maxval=bound)

    # x is only used for its trailing (Lq, Lk) shape, matching PyTorch forward.
    x = jax.random.normal(k_x, (batch, channels, length_q, length_k),
                          dtype=jnp.float32)

    # 1) Pallas path on the small square shape (grid = 2, phases = 4).
    out = relative_position_forward(x, embeddings_table, max_relative_position,
                                    force_pallas=True)
    out = jax.block_until_ready(out)
    ref = _reference_forward(x, embeddings_table, max_relative_position)
    assert out.shape == (length_q, length_k, num_units)
    assert jnp.array_equal(out, ref), "mismatch vs reference gather"

    # 2) Lq != Lk, multi-step balanced parallel grid (tile_q = 48, grid = 2).
    x2 = jnp.zeros((1, 1, 96, 80), dtype=jnp.float32)
    out2 = jax.block_until_ready(
        relative_position_forward(x2, embeddings_table, max_relative_position,
                                  force_pallas=True))
    ref2 = _reference_forward(x2, embeddings_table, max_relative_position)
    assert out2.shape == (96, 80, num_units)
    assert jnp.array_equal(out2, ref2), "mismatch vs reference (grid>1)"

    # 3) Ragged shapes: Lq not a multiple of 8 (padded rows clamped + sliced),
    #    Lk*U not a multiple of 128 (masked tail stores).
    x3 = jnp.zeros((1, 1, 37, 21), dtype=jnp.float32)
    out3 = jax.block_until_ready(
        relative_position_forward(x3, embeddings_table, max_relative_position,
                                  force_pallas=True))
    ref3 = _reference_forward(x3, embeddings_table, max_relative_position)
    assert out3.shape == (37, 21, num_units)
    assert jnp.array_equal(out3, ref3), "mismatch vs reference (ragged)"

    # 4) Default dispatch: tiny shapes take the plain-XLA fast path.
    out4 = jax.block_until_ready(
        relative_position_forward(x, embeddings_table, max_relative_position))
    assert jnp.array_equal(out4, ref), "mismatch vs reference (XLA fast path)"

    print("KERNEL_OK")
</pallas_src>

<mosaic_0001>
module attributes {stable_mosaic.version = 11 : i64} {
  func.func @_relative_position_kernel(%arg0: i32, %arg1: memref<4x1024xf32, #tpu.memory_space<vmem>>, %arg2: memref<8x512xf32, #tpu.memory_space<vmem>>) attributes {dimension_semantics = [#tpu.dimension_semantics<parallel>], iteration_bounds = array<i64: 2>, scalar_prefetch = 0 : i64, scratch_operands = 0 : i64, tpu.core_type = #tpu.core_type<tc>, window_params = [{pipeline_mode = #tpu.pipeline_mode<synchronous>, transform_indices = @transform_0, window_bounds = array<i64: 4, 1024>}, {transform_indices = @transform_1, window_bounds = array<i64: 8, 512>}]} {
    %c8_i32 = arith.constant 8 : i32
    %0 = arith.muli %arg0, %c8_i32 : i32
    %c0_i32 = arith.constant 0 : i32
    %c4_i32 = arith.constant 4 : i32
    %1 = arith.muli %c0_i32, %c4_i32 : i32
    %c0_i32_0 = arith.constant 0 : i32
    %2 = arith.addi %1, %c0_i32_0 : i32
    %3 = arith.addi %0, %2 : i32
    %c15_i32 = arith.constant 15 : i32
    %4 = arith.subi %c15_i32, %3 : i32
    %c3_i32 = arith.constant 3 : i32
    %5 = arith.subi %4, %c3_i32 : i32
    %c0_i32_1 = arith.constant 0 : i32
    %6 = arith.maxsi %5, %c0_i32_1 : i32
    %c32_i32 = arith.constant 32 : i32
    %7 = arith.muli %6, %c32_i32 : i32
    %8 = tpu.assume_multiple %7, 128 : i32
    %c3 = arith.constant 3 : index
    %9 = arith.index_cast %8 : i32 to index
    %10 = vector.load %arg1[%c3, %9] : memref<4x1024xf32, #tpu.memory_space<vmem>>, vector<1x512xf32>
    %11 = vector.shape_cast %10 : vector<1x512xf32> to vector<512xf32>
    %12 = arith.index_cast %2 : i32 to index
    %c0 = arith.constant 0 : index
    %13 = vector.load %arg2[%12, %c0] : memref<8x512xf32, #tpu.memory_space<vmem>>, vector<1x512xf32>
    %14 = vector.shape_cast %13 : vector<1x512xf32> to vector<512xf32>
    %15 = vector.shape_cast %11 : vector<512xf32> to vector<1x512xf32>
    tpu.vector_store %arg2[%12, %c0], %15 {strides = array<i32>} : memref<8x512xf32, #tpu.memory_space<vmem>>, vector<1x512xf32>,
    %c1_i32 = arith.constant 1 : i32
    %16 = arith.addi %1, %c1_i32 : i32
    %17 = arith.addi %0, %16 : i32
    %c15_i32_2 = arith.constant 15 : i32
    %18 = arith.subi %c15_i32_2, %17 : i32
    %c2_i32 = arith.constant 2 : i32
    %19 = arith.subi %18, %c2_i32 : i32
    %c0_i32_3 = arith.constant 0 : i32
    %20 = arith.maxsi %19, %c0_i32_3 : i32
    %c32_i32_4 = arith.constant 32 : i32
    %21 = arith.muli %20, %c32_i32_4 : i32
    %22 = tpu.assume_multiple %21, 128 : i32
    %c2 = arith.constant 2 : index
    %23 = arith.index_cast %22 : i32 to index
    %24 = vector.load %arg1[%c2, %23] : memref<4x1024xf32, #tpu.memory_space<vmem>>, vector<1x512xf32>
    %25 = vector.shape_cast %24 : vector<1x512xf32> to vector<512xf32>
    %26 = arith.index_cast %16 : i32 to index
    %c0_5 = arith.constant 0 : index
    %27 = vector.load %arg2[%26, %c0_5] : memref<8x512xf32, #tpu.memory_space<vmem>>, vector<1x512xf32>
    %28 = vector.shape_cast %27 : vector<1x512xf32> to vector<512xf32>
    %29 = vector.shape_cast %25 : vector<512xf32> to vector<1x512xf32>
    tpu.vector_store %arg2[%26, %c0_5], %29 {strides = array<i32>} : memref<8x512xf32, #tpu.memory_space<vmem>>, vector<1x512xf32>,
    %c2_i32_6 = arith.constant 2 : i32
    %30 = arith.addi %1, %c2_i32_6 : i32
    %31 = arith.addi %0, %30 : i32
    %c15_i32_7 = arith.constant 15 : i32
    %32 = arith.subi %c15_i32_7, %31 : i32
    %c1_i32_8 = arith.constant 1 : i32
    %33 = arith.subi %32, %c1_i32_8 : i32
    %c0_i32_9 = arith.constant 0 : i32
    %34 = arith.maxsi %33, %c0_i32_9 : i32
    %c32_i32_10 = arith.constant 32 : i32
    %35 = arith.muli %34, %c32_i32_10 : i32
    %36 = tpu.assume_multiple %35, 128 : i32
    %c1 = arith.constant 1 : index
    %37 = arith.index_cast %36 : i32 to index
    %38 = vector.load %arg1[%c1, %37] : memref<4x1024xf32, #tpu.memory_space<vmem>>, vector<1x512xf32>
    %39 = vector.shape_cast %38 : vector<1x512xf32> to vector<512xf32>
    %40 = arith.index_cast %30 : i32 to index
    %c0_11 = arith.constant 0 : index
    %41 = vector.load %arg2[%40, %c0_11] : memref<8x512xf32, #tpu.memory_space<vmem>>, vector<1x512xf32>
    %42 = vector.shape_cast %41 : vector<1x512xf32> to vector<512xf32>
    %43 = vector.shape_cast %39 : vector<512xf32> to vector<1x512xf32>
    tpu.vector_store %arg2[%40, %c0_11], %43 {strides = array<i32>} : memref<8x512xf32, #tpu.memory_space<vmem>>, vector<1x512xf32>,
    %c3_i32_12 = arith.constant 3 : i32
    %44 = arith.addi %1, %c3_i32_12 : i32
    %45 = arith.addi %0, %44 : i32
    %c15_i32_13 = arith.constant 15 : i32
    %46 = arith.subi %c15_i32_13, %45 : i32
    %c0_i32_14 = arith.constant 0 : i32
    %47 = arith.subi %46, %c0_i32_14 : i32
    %c0_i32_15 = arith.constant 0 : i32
    %48 = arith.maxsi %47, %c0_i32_15 : i32
    %c32_i32_16 = arith.constant 32 : i32
    %49 = arith.muli %48, %c32_i32_16 : i32
    %50 = tpu.assume_multiple %49, 128 : i32
    %c0_17 = arith.constant 0 : index
    %51 = arith.index_cast %50 : i32 to index
    %52 = vector.load %arg1[%c0_17, %51] : memref<4x1024xf32, #tpu.memory_space<vmem>>, vector<1x512xf32>
    %53 = vector.shape_cast %52 : vector<1x512xf32> to vector<512xf32>
    %54 = arith.index_cast %44 : i32 to index
    %c0_18 = arith.constant 0 : index
    %55 = vector.load %arg2[%54, %c0_18] : memref<8x512xf32, #tpu.memory_space<vmem>>, vector<1x512xf32>
    %56 = vector.shape_cast %55 : vector<1x512xf32> to vector<512xf32>
    %57 = vector.shape_cast %53 : vector<512xf32> to vector<1x512xf32>
    tpu.vector_store %arg2[%54, %c0_18], %57 {strides = array<i32>} : memref<8x512xf32, #tpu.memory_space<vmem>>, vector<1x512xf32>,
    %c1_i32_19 = arith.constant 1 : i32
    %c4_i32_20 = arith.constant 4 : i32
    %58 = arith.muli %c1_i32_19, %c4_i32_20 : i32
    %c0_i32_21 = arith.constant 0 : i32
    %59 = arith.addi %58, %c0_i32_21 : i32
    %60 = arith.addi %0, %59 : i32
    %c15_i32_22 = arith.constant 15 : i32
    %61 = arith.subi %c15_i32_22, %60 : i32
    %c3_i32_23 = arith.constant 3 : i32
    %62 = arith.subi %61, %c3_i32_23 : i32
    %c0_i32_24 = arith.constant 0 : i32
    %63 = arith.maxsi %62, %c0_i32_24 : i32
    %c32_i32_25 = arith.constant 32 : i32
    %64 = arith.muli %63, %c32_i32_25 : i32
    %65 = tpu.assume_multiple %64, 128 : i32
    %c3_26 = arith.constant 3 : index
    %66 = arith.index_cast %65 : i32 to index
    %67 = vector.load %arg1[%c3_26, %66] : memref<4x1024xf32, #tpu.memory_space<vmem>>, vector<1x512xf32>
    %68 = vector.shape_cast %67 : vector<1x512xf32> to vector<512xf32>
    %69 = arith.index_cast %59 : i32 to index
    %c0_27 = arith.constant 0 : index
    %70 = vector.load %arg2[%69, %c0_27] : memref<8x512xf32, #tpu.memory_space<vmem>>, vector<1x512xf32>
    %71 = vector.shape_cast %70 : vector<1x512xf32> to vector<512xf32>
    %72 = vector.shape_cast %68 : vector<512xf32> to vector<1x512xf32>
    tpu.vector_store %arg2[%69, %c0_27], %72 {strides = array<i32>} : memref<8x512xf32, #tpu.memory_space<vmem>>, vector<1x512xf32>,
    %c1_i32_28 = arith.constant 1 : i32
    %73 = arith.addi %58, %c1_i32_28 : i32
    %74 = arith.addi %0, %73 : i32
    %c15_i32_29 = arith.constant 15 : i32
    %75 = arith.subi %c15_i32_29, %74 : i32
    %c2_i32_30 = arith.constant 2 : i32
    %76 = arith.subi %75, %c2_i32_30 : i32
    %c0_i32_31 = arith.constant 0 : i32
    %77 = arith.maxsi %76, %c0_i32_31 : i32
    %c32_i32_32 = arith.constant 32 : i32
    %78 = arith.muli %77, %c32_i32_32 : i32
    %79 = tpu.assume_multiple %78, 128 : i32
    %c2_33 = arith.constant 2 : index
    %80 = arith.index_cast %79 : i32 to index
    %81 = vector.load %arg1[%c2_33, %80] : memref<4x1024xf32, #tpu.memory_space<vmem>>, vector<1x512xf32>
    %82 = vector.shape_cast %81 : vector<1x512xf32> to vector<512xf32>
    %83 = arith.index_cast %73 : i32 to index
    %c0_34 = arith.constant 0 : index
    %84 = vector.load %arg2[%83, %c0_34] : memref<8x512xf32, #tpu.memory_space<vmem>>, vector<1x512xf32>
    %85 = vector.shape_cast %84 : vector<1x512xf32> to vector<512xf32>
    %86 = vector.shape_cast %82 : vector<512xf32> to vector<1x512xf32>
    tpu.vector_store %arg2[%83, %c0_34], %86 {strides = array<i32>} : memref<8x512xf32, #tpu.memory_space<vmem>>, vector<1x512xf32>,
    %c2_i32_35 = arith.constant 2 : i32
    %87 = arith.addi %58, %c2_i32_35 : i32
    %88 = arith.addi %0, %87 : i32
    %c15_i32_36 = arith.constant 15 : i32
    %89 = arith.subi %c15_i32_36, %88 : i32
    %c1_i32_37 = arith.constant 1 : i32
    %90 = arith.subi %89, %c1_i32_37 : i32
    %c0_i32_38 = arith.constant 0 : i32
    %91 = arith.maxsi %90, %c0_i32_38 : i32
    %c32_i32_39 = arith.constant 32 : i32
    %92 = arith.muli %91, %c32_i32_39 : i32
    %93 = tpu.assume_multiple %92, 128 : i32
    %c1_40 = arith.constant 1 : index
    %94 = arith.index_cast %93 : i32 to index
    %95 = vector.load %arg1[%c1_40, %94] : memref<4x1024xf32, #tpu.memory_space<vmem>>, vector<1x512xf32>
    %96 = vector.shape_cast %95 : vector<1x512xf32> to vector<512xf32>
    %97 = arith.index_cast %87 : i32 to index
    %c0_41 = arith.constant 0 : index
    %98 = vector.load %arg2[%97, %c0_41] : memref<8x512xf32, #tpu.memory_space<vmem>>, vector<1x512xf32>
    %99 = vector.shape_cast %98 : vector<1x512xf32> to vector<512xf32>
    %100 = vector.shape_cast %96 : vector<512xf32> to vector<1x512xf32>
    tpu.vector_store %arg2[%97, %c0_41], %100 {strides = array<i32>} : memref<8x512xf32, #tpu.memory_space<vmem>>, vector<1x512xf32>,
    %c3_i32_42 = arith.constant 3 : i32
    %101 = arith.addi %58, %c3_i32_42 : i32
    %102 = arith.addi %0, %101 : i32
    %c15_i32_43 = arith.constant 15 : i32
    %103 = arith.subi %c15_i32_43, %102 : i32
    %c0_i32_44 = arith.constant 0 : i32
    %104 = arith.subi %103, %c0_i32_44 : i32
    %c0_i32_45 = arith.constant 0 : i32
    %105 = arith.maxsi %104, %c0_i32_45 : i32
    %c32_i32_46 = arith.constant 32 : i32
    %106 = arith.muli %105, %c32_i32_46 : i32
    %107 = tpu.assume_multiple %106, 128 : i32
    %c0_47 = arith.constant 0 : index
    %108 = arith.index_cast %107 : i32 to index
    %109 = vector.load %arg1[%c0_47, %108] : memref<4x1024xf32, #tpu.memory_space<vmem>>, vector<1x512xf32>
    %110 = vector.shape_cast %109 : vector<1x512xf32> to vector<512xf32>
    %111 = arith.index_cast %101 : i32 to index
    %c0_48 = arith.constant 0 : index
    %112 = vector.load %arg2[%111, %c0_48] : memref<8x512xf32, #tpu.memory_space<vmem>>, vector<1x512xf32>
    %113 = vector.shape_cast %112 : vector<1x512xf32> to vector<512xf32>
    %114 = vector.shape_cast %110 : vector<512xf32> to vector<1x512xf32>
    tpu.vector_store %arg2[%111, %c0_48], %114 {strides = array<i32>} : memref<8x512xf32, #tpu.memory_space<vmem>>, vector<1x512xf32>,
    %c2_i32_49 = arith.constant 2 : i32
    return
  }
  func.func @transform_0(%arg0: i32) -> (i32, i32) {
    %c0_i32 = arith.constant 0 : i32
    %c0_i32_0 = arith.constant 0 : i32
    %c0_i32_1 = arith.constant 0 : i32
    return %c0_i32, %c0_i32_0 : i32, i32
  }
  func.func @transform_1(%arg0: i32) -> (i32, i32) {
    %c0_i32 = arith.constant 0 : i32
    %c0_i32_0 = arith.constant 0 : i32
    return %arg0, %c0_i32 : i32, i32
  }
}

</mosaic_0001>

<llo_original>
// kernel: tpu_custom_call.1
$region0: #{tpu_custom_call.1}
  #allocation0 [shape = 'u32[]', space=smem, size = 0x4, offset = 0x4, fixed_abs, tag = 'smem constant byte address 0x4 - core index']
  #allocation1 [shape = 'u32[72,128]{1,0:T(1,128)}', space=vmem, size = 0x9000, scoped, tag = 'internal scratch']
  %s0 = inlined_call_operand.hbm [shape: f32[4,1024], index: 0, kind: input, shape index: {}]
  %s1 = inlined_call_operand.hbm [shape: f32[16,512], index: 1, kind: output, shape index: {}]
  %s2 = sld [smem:[#allocation0]]
  $region41: #{tpu_custom_call.1} parent=0
    _
  %s4 = ssub.s32 1, %s2
  %s5 = scalar_select 0, %s4, %s2
  $region1: #{tpu_custom_call.1} parent=0
    #allocation2 [shape = 'u8[16384]{0}', space=vmem, size = 0x4000, scoped, tag = 'input window, operand 0, single buffered']
    #allocation3 [shape = 's32[2]{0}', space=sflag, size = 0x8, scoped, tag = 'scoped memory for tpu_custom_call.1']
    #allocation4 [shape = 's32[2]{0}', space=sflag, size = 0x8, scoped, tag = 'scoped memory for tpu_custom_call.1']
    #allocation5 [shape = 'u8[32768]{0}', space=vmem, size = 0x8000, scoped, tag = 'output window, operand 0']
    %6 = vsyncpa [#allocation3], 0
    %7 = vsyncpa [#allocation4], 0
    %s8 = scalar_lea.sflag [#allocation4], 1
    %9 = vsyncpa %s8, 0
    loop: start=0, step=1, limit=4
    $region2: #{tpu_custom_call.1} parent=1 // loop_pre_header
      _
    $region3: #{tpu_custom_call.1} parent=1 // loop_header
      %s11 = sphi 0, %s15
      %p12 = scmp.ge.s32.totalorder %s11, 4
      %s19 = sphi 0, %s19
      %s21 = sphi 0, %s19
      %s22 = sphi 0, %s21
      %s36 = sphi 0, %s22
      %s42 = sphi 0, %s44
      %s45 = sphi 0, %s42
      %s46 = sphi 0, %s45
      %s62 = sphi 0, %s46
    $region4: #{tpu_custom_call.1} parent=1 // loop_header_branch
      %14 = sbr.rel (%p12) target = $region8
    $region5: #{tpu_custom_call.1} parent=1 // loop_body
      %s16 = ssub.s32 %s11, 1
      %s17 = ssub.s32 %s11, 2
      %s18 = sadd.s32 %s11, 1
      %s20 = sadd.s32 %s19, 1
      %p23 = scmp.eq.s32.totalorder %s11, 1
      %p24 = scmp.ne.s32.totalorder %s19, %s21
      %p25 = scmp.eq.s32.totalorder %s11, 0
      %p26 = por %p24, %p25
      %p27 = scmp.ne.s32.totalorder %s19, %s21
      %p28 = scmp.eq.s32.totalorder %s16, 1
      %p29 = por %p27, %p28
      %p30 = scmp.ne.s32.totalorder %s21, %s22
      %p31 = scmp.eq.s32.totalorder %s16, 0
      %p32 = por %p30, %p31
      %p33 = scmp.ne.s32.totalorder %s21, %s22
      %p34 = scmp.eq.s32.totalorder %s17, 1
      %p35 = por %p33, %p34
      %p37 = scmp.ne.s32.totalorder %s22, %s36
      %p38 = scmp.eq.s32.totalorder %s17, 0
      %p39 = por %p37, %p38
      %s40 = ssub.s32 %s11, %s18
      %p41 = scmp.eq.s32.totalorder %s40, 0
      %s43 = sadd.s32 %s42, 1
      %s44 = scalar_select %p41, %s42, %s43
      %p47 = pneg %p41
      %p48 = scmp.eq.s32.totalorder %s11, 1
      %p49 = por %p47, %p48
      %p50 = scmp.ne.s32.totalorder %s42, %s45
      %p51 = scmp.eq.s32.totalorder %s11, 0
      %p52 = por %p50, %p51
      %p53 = scmp.ne.s32.totalorder %s42, %s45
      %p54 = scmp.eq.s32.totalorder %s16, 1
      %p55 = por %p53, %p54
      %p56 = scmp.ne.s32.totalorder %s45, %s46
      %p57 = scmp.eq.s32.totalorder %s16, 0
      %p58 = por %p56, %p57
      %p59 = scmp.ne.s32.totalorder %s45, %s46
      %p60 = scmp.eq.s32.totalorder %s17, 1
      %p61 = por %p59, %p60
      %p63 = scmp.ne.s32.totalorder %s46, %s62
      %p64 = scmp.eq.s32.totalorder %s17, 0
      %p65 = por %p63, %p64
      %p66 = scmp.le.s32.totalorder 1, %s11
      %p67 = scmp.lt.s32.totalorder %s11, 3
      %p68 = pnand %p66, %p67
      %p69 = pneg %p68
      // Predicated region
      $region9: #{tpu_custom_call.1} parent=5 // pred_check
        _
      $region10: #{tpu_custom_call.1} parent=5 // pred_check_branch
        %71 = sbr.rel (%p68) target = $region12
      $region11: #{tpu_custom_call.1} parent=5 // pred_region
        %s72 = ssub.s32 %s11, 1
        // Predicated region
        $region13: #{tpu_custom_call.1} parent=11 // pred_check
          %p73 = pneg %p32
        $region14: #{tpu_custom_call.1} parent=11 // pred_check_branch
          %75 = sbr.rel (%p73) target = $region16
        $region15: #{tpu_custom_call.1} parent=11 // pred_region
          %77 = vsyncadd [#allocation3], 0
          %s79 = sshll.u32 %s0, 4
          %s80 = int_to_ptr.hbm [resolvable:$true] %s79
          %s81 = sshll.u32 [#allocation2], 4
          %s82 = int_to_ptr.vmem [resolvable:$true] %s81
          %84 = dma.hbm_to_vmem [thread:$0]  %s80, 512, %s82, [#allocation3]
        $region16: #{tpu_custom_call.1} parent=11 // pred_fallthru
          _
      $region12: #{tpu_custom_call.1} parent=5 // pred_fallthru
        _
      %p85 = scmp.lt.s32.totalorder %s11, 2
      // Predicated region
      $region17: #{tpu_custom_call.1} parent=5 // pred_check
        %p86 = pneg %p85
      $region18: #{tpu_custom_call.1} parent=5 // pred_check_branch
        %88 = sbr.rel (%p86) target = $region20
      $region19: #{tpu_custom_call.1} parent=5 // pred_region
        _
      $region20: #{tpu_custom_call.1} parent=5 // pred_fallthru
        _
      %p89 = scmp.le.s32.totalorder 1, %s11
      %p90 = scmp.lt.s32.totalorder %s11, 3
      %p91 = pnand %p89, %p90
      %p92 = pneg %p91
      // Predicated region
      $region21: #{tpu_custom_call.1} parent=5 // pred_check
        _
      $region22: #{tpu_custom_call.1} parent=5 // pred_check_branch
        %94 = sbr.rel (%p91) target = $region24
      $region23: #{tpu_custom_call.1} parent=5 // pred_region
        %s95 = ssub.s32 %s11, 1
        // Predicated region
        $region25: #{tpu_custom_call.1} parent=23 // pred_check
          %p96 = pneg %p32
        $region26: #{tpu_custom_call.1} parent=23 // pred_check_branch
          %98 = sbr.rel (%p96) target = $region28
        $region27: #{tpu_custom_call.1} parent=23 // pred_region
          %100 = dma.done [#allocation3], 512
        $region28: #{tpu_custom_call.1} parent=23 // pred_fallthru
          _
        %p101 = pneg %p32
        %p102 = pneg %p29
        %p103 = pneg %p58
        %p104 = pneg %p55
        %s105 = sand.u32 %s45, 1
        %s106 = scalar_lea.sflag [#allocation4], %s105
        %s107 = sand.u32 %s45, 1
        %s108 = smul.addr %s107, 32
        %s109 = scalar_lea.vmem [#allocation5], %s108
        %s110 = smul.u32 %s16, 8
        %s111 = ssub.s32 12, %s110
        %p112 = scmp.gt.s32.totalorder %s111, 0
        %s113 = scalar_select %p112, %s111, 0
        %s114 = smul.u32 %s113, 32
        %s115 = sshra.s32 %s114, 7
        %s116 = sand.u32 %s114, 127
        %s117 = smul.addr %s115, 4
        %s118 = scalar_lea.vmem [#allocation2], %s117
        %s119 = scalar_lea.vmem %s118, 3 [#allocation2]
        %v120 = vld [vmem:[%s119] ss:$4 sm:$0xf]
        %v121 = vlaneseq
        %vm122 = vcmp.ge.s32.totalorder %v121, 0
        %vm123 = vcmp.lt.s32.totalorder %v121, 512
        %vm124 = vmand %vm122, %vm123
        %125 = vst.msk [vmem:[%s109] ss:$8 sm:$0xf] %vm124, %v120
        %126 = vst.msk [vmem:[%s109] ss:$8 sm:$0x0] %vm124, %v120
        %s127 = scalar_lea.vmem %s118, 2 [#allocation2]
        %v128 = vld [vmem:[%s127] ss:$4 sm:$0xf]
        %s129 = scalar_lea.vmem %s109, 1 [#allocation5]
        %130 = vst.msk [vmem:[%s129] ss:$8 sm:$0xf] %vm124, %v128
        %131 = vst.msk [vmem:[%s129] ss:$8 sm:$0x0] %vm124, %v128
        %s132 = scalar_lea.vmem %s118, 1 [#allocation2]
        %v133 = vld [vmem:[%s132] ss:$4 sm:$0xf]
        %s134 = scalar_lea.vmem %s109, 2 [#allocation5]
        %135 = vst.msk [vmem:[%s134] ss:$8 sm:$0xf] %vm124, %v133
        %136 = vst.msk [vmem:[%s134] ss:$8 sm:$0x0] %vm124, %v133
        %v137 = vld [vmem:[%s118] ss:$4 sm:$0xf]
        %s138 = scalar_lea.vmem %s109, 3 [#allocation5]
        %139 = vst.msk [vmem:[%s138] ss:$8 sm:$0xf] %vm124, %v137
        %140 = vst.msk [vmem:[%s138] ss:$8 sm:$0x0] %vm124, %v137
        %s141 = ssub.s32 8, %s110
        %p142 = scmp.gt.s32.totalorder %s141, 0
        %s143 = scalar_select %p142, %s141, 0
        %s144 = smul.u32 %s143, 32
        %s145 = sshra.s32 %s144, 7
        %s146 = sand.u32 %s144, 127
        %s147 = smul.addr %s145, 4
        %s148 = scalar_lea.vmem [#allocation2], %s147
        %s149 = scalar_lea.vmem %s148, 3 [#allocation2]
        %v150 = vld [vmem:[%s149] ss:$4 sm:$0xf]
        %s151 = scalar_lea.vmem %s109, 4 [#allocation5]
        %152 = vst.msk [vmem:[%s151] ss:$8 sm:$0xf] %vm124, %v150
        %153 = vst.msk [vmem:[%s151] ss:$8 sm:$0x0] %vm124, %v150
        %s154 = scalar_lea.vmem %s148, 2 [#allocation2]
        %v155 = vld [vmem:[%s154] ss:$4 sm:$0xf]
        %s156 = scalar_lea.vmem %s109, 5 [#allocation5]
        %157 = vst.msk [vmem:[%s156] ss:$8 sm:$0xf] %vm124, %v155
        %158 = vst.msk [vmem:[%s156] ss:$8 sm:$0x0] %vm124, %v155
        %s159 = scalar_lea.vmem %s148, 1 [#allocation2]
        %v160 = vld [vmem:[%s159] ss:$4 sm:$0xf]
        %s161 = scalar_lea.vmem %s109, 6 [#allocation5]
        %162 = vst.msk [vmem:[%s161] ss:$8 sm:$0xf] %vm124, %v160
        %163 = vst.msk [vmem:[%s161] ss:$8 sm:$0x0] %vm124, %v160
        %v164 = vld [vmem:[%s148] ss:$4 sm:$0xf]
        %s165 = scalar_lea.vmem %s109, 7 [#allocation5]
        %166 = vst.msk [vmem:[%s165] ss:$8 sm:$0xf] %vm124, %v164
        %167 = vst.msk [vmem:[%s165] ss:$8 sm:$0x0] %vm124, %v164
        %s168 = sand.u32 %s45, 1
        %s169 = scalar_lea.sflag [#allocation4], %s168
        %s170 = sand.u32 %s45, 1
        %s171 = smul.addr %s170, 32
        %s172 = scalar_lea.vmem [#allocation5], %s171
        // Predicated region
        $region29: #{tpu_custom_call.1} parent=23 // pred_check
          %p173 = pneg %p55
        $region30: #{tpu_custom_call.1} parent=23 // pred_check_branch
          %175 = sbr.rel (%p173) target = $region32
        $region31: #{tpu_custom_call.1} parent=23 // pred_region
          %177 = vsyncadd %s169, 0
          %s178 = smul.addr %s16, 4
          %s179 = smul.addr %s178, 8
          %s180 = scalar_lea.hbm %s1, %s179
          %s182 = sshll.u32 %s172, 4
          %s183 = int_to_ptr.vmem [resolvable:$true] %s182
          %s184 = sshll.u32 %s180, 4
          %s185 = int_to_ptr.hbm [resolvable:$true] %s184
          %187 = dma.vmem_to_hbm [thread:$0]  %s183, 512, %s185, %s169
        $region32: #{tpu_custom_call.1} parent=23 // pred_fallthru
          _
      $region24: #{tpu_custom_call.1} parent=5 // pred_fallthru
        _
      %p188 = scmp.le.s32.totalorder 2, %s11
      // Predicated region
      $region33: #{tpu_custom_call.1} parent=5 // pred_check
        %p189 = pneg %p188
      $region34: #{tpu_custom_call.1} parent=5 // pred_check_branch
        %191 = sbr.rel (%p189) target = $region36
      $region35: #{tpu_custom_call.1} parent=5 // pred_region
        %s192 = ssub.s32 %s11, 2
        // Predicated region
        $region37: #{tpu_custom_call.1} parent=35 // pred_check
          %p193 = pneg %p61
        $region38: #{tpu_custom_call.1} parent=35 // pred_check_branch
          %195 = sbr.rel (%p193) target = $region40
        $region39: #{tpu_custom_call.1} parent=35 // pred_region
          %s196 = sand.u32 %s46, 1
          %s197 = scalar_lea.sflag [#allocation4], %s196
          %s198 = sand.u32 %s46, 1
          %s199 = smul.addr %s198, 32
          %s200 = scalar_lea.vmem [#allocation5], %s199
          %202 = dma.done %s197, 512
        $region40: #{tpu_custom_call.1} parent=35 // pred_fallthru
          _
      $region36: #{tpu_custom_call.1} parent=5 // pred_fallthru
        _
    $region6: #{tpu_custom_call.1} parent=1 // loop_footer
      %s15 = sadd.s32 1, %s11
    $region7: #{tpu_custom_call.1} parent=1 // loop_footer_branch
      %10 = sbr.rel target = $region3
    $region8: #{tpu_custom_call.1} parent=1 // loop_exit
      _
    %203 = vsyncpa [#allocation3], 1
    %s204 = scalar_lea.sflag [#allocation3], 1
    %205 = vsyncpa %s204, 1
    %206 = vsyncpa [#allocation4], 1
    %s207 = scalar_lea.sflag [#allocation4], 1
    %208 = vsyncpa %s207, 1

</llo_original>
